<compile_context>
chip_gen: v6e
topology: v6e:2x2x1
jax: 0.10.0
libtpu: 0.0.40
codegen_flags: <defaults>
</compile_context>

<pallas_src>
import functools

import jax
import jax.numpy as jnp
from jax.experimental import pallas as pl
from jax.experimental.pallas import tpu as pltpu


def _round_up(x, m):
    return (x + m - 1) // m * m


def _loss_kernel(*refs, num_classes, gamma, label_smoothing,
                 has_choice, has_weights, n_valid, tile, needs_mask):
    """Per-tile focal CE + correct-count, accumulated into lane-dense scratch."""
    idx = 0
    pred_ref = refs[idx]; idx += 1          # (C, T) logits (any float dtype)
    tgt_ref = refs[idx]; idx += 1           # (1, T) int32
    choice_ref = None
    if has_choice:
        choice_ref = refs[idx]; idx += 1    # (1, T) int32
    w_ref = None
    if has_weights:
        w_ref = refs[idx]; idx += 1         # (C, 1) f32
    loss_out, corr_out, loss_acc, corr_acc = refs[idx:idx + 4]

    ip = pl.program_id(0)
    j = pl.program_id(1)
    nj = pl.num_programs(1)

    @pl.when(j == 0)
    def _():
        loss_acc[...] = jnp.zeros_like(loss_acc)
        corr_acc[...] = jnp.zeros_like(corr_acc)

    logits = pred_ref[...].astype(jnp.float32)                 # (C, T)
    tgt = tgt_ref[...]                                         # (1, T)

    cls_iota = jax.lax.broadcasted_iota(jnp.int32, logits.shape, 0)   # (C, T)
    is_tgt = cls_iota == tgt                                          # (C, T)

    # class-axis reductions over <= 2 sublane vregs per 128-point column
    m = jnp.max(logits, axis=0, keepdims=True)                        # (1, T)
    sumexp = jnp.sum(jnp.exp(logits - m), axis=0, keepdims=True)      # (1, T)
    lse = m + jnp.log(sumexp)                                         # (1, T)
    t_logit = jnp.sum(jnp.where(is_tgt, logits, 0.0), axis=0, keepdims=True)

    # probability of the true class (softmax[target])
    pn = jnp.exp(t_logit - lse)                                       # (1, T)

    ls = label_smoothing
    if ls == 0.0 and not has_weights:
        # default fast path: no log_p / q materialization
        ce = lse - t_logit
    elif not has_weights:
        # -sum(q*log_p) = lse - [(1-ls)*logit[t] + (ls/C)*sum(logits)]
        sum_logits = jnp.sum(logits, axis=0, keepdims=True)
        ce = lse - ((1.0 - ls) * t_logit + (ls / num_classes) * sum_logits)
    else:
        # TODO(synk): PyTorch CrossEntropyLoss(weight=..., reduction='mean')
        # divides by sum(w[target]); here the final reduction is a plain mean.
        w = w_ref[...]                                                # (C, 1)
        qw = ((1.0 - ls) * is_tgt.astype(jnp.float32) + (ls / num_classes)) * w
        ce = (jnp.sum(qw, axis=0, keepdims=True) * lse
              - jnp.sum(qw * logits, axis=0, keepdims=True))

    if gamma == 0:
        focal = ce
    elif gamma == 1:
        focal = (1.0 - pn) * ce
    else:
        focal = jnp.power(jnp.maximum(1.0 - pn, 1e-12), float(gamma)) * ce

    if has_choice:
        correct = (choice_ref[...] == tgt).astype(jnp.float32)        # (1, T)
    else:
        # in-kernel argmax with first-max tie-breaking (matches jnp/torch argmax);
        # tie-break min-reduce stays in int32 over the small sublane axis.
        cand = jnp.where(logits == m, cls_iota, jnp.int32(num_classes))
        pred_cls = jnp.min(cand, axis=0, keepdims=True)               # (1, T)
        correct = (pred_cls == tgt).astype(jnp.float32)

    if needs_mask:
        blk = ip * nj + j
        contains_pad = (blk + 1) * tile > n_valid                     # scalar bool

        @pl.when(jnp.logical_not(contains_pad))
        def _():
            loss_acc[...] += focal
            corr_acc[...] += correct

        @pl.when(contains_pad)
        def _():
            lane = jax.lax.broadcasted_iota(jnp.int32, (1, tile), 1)
            valid = ((blk * tile + lane) < n_valid).astype(jnp.float32)
            loss_acc[...] += focal * valid
            corr_acc[...] += correct * valid
    else:
        loss_acc[...] += focal
        corr_acc[...] += correct

    @pl.when(j == nj - 1)
    def _():
        loss_out[...] = jnp.sum(loss_acc[...]).reshape(1, 1, 1)
        corr_out[...] = jnp.sum(corr_acc[...]).reshape(1, 1, 1)


def pointnet_sem_seg_loss(pred, target, pred_choice=None, *,
                          label_smoothing=0.0, gamma=1, dice=True,
                          dice_eps=1.0, weights=None,
                          tile_points=8192, num_parallel=2):
    """pred: (B,N,C) logits; target/pred_choice: (B,N) int labels.

    pred_choice=None computes the argmax in-kernel (avoids a second HBM pass
    over pred); passing it explicitly reproduces the module's forward signature.
    """
    B, N, C = pred.shape
    P = B * N

    # lane-dense layout: points on the 128-lane axis, classes on sublanes
    tile = max(128, min(int(tile_points), _round_up(P, 128)))
    tile = _round_up(tile, 128)

    n_par = max(1, int(num_parallel))
    if P < 4 * tile:            # small problems: don't split across TensorCores
        n_par = 1

    n_inner = -(-P // (n_par * tile))
    P_pad = n_par * tile * n_inner
    needs_mask = P_pad != P

    # keep the source dtype (e.g. bf16 logits) — cast to f32 inside the kernel
    pred_t = pred.reshape(P, C).T                       # (C, P) lane-dense view
    tgt_flat = target.reshape(1, P).astype(jnp.int32)   # (1, P) lane-dense

    col_map = lambda ip, j: (0, ip * n_inner + j)

    point_inputs = [pred_t, tgt_flat]
    in_specs = [pl.BlockSpec((C, tile), col_map),
                pl.BlockSpec((1, tile), col_map)]

    has_choice = pred_choice is not None
    if has_choice:
        point_inputs.append(pred_choice.reshape(1, P).astype(jnp.int32))
        in_specs.append(pl.BlockSpec((1, tile), col_map))

    if needs_mask:
        pad = P_pad - P
        point_inputs = [jnp.pad(x, ((0, 0), (0, pad))) for x in point_inputs]

    inputs = list(point_inputs)
    has_weights = weights is not None
    if has_weights:
        inputs.append(jnp.asarray(weights, jnp.float32).reshape(C, 1))
        in_specs.append(pl.BlockSpec((C, 1), lambda ip, j: (0, 0)))

    kernel = functools.partial(
        _loss_kernel, num_classes=C, gamma=gamma,
        label_smoothing=float(label_smoothing),
        has_choice=has_choice, has_weights=has_weights,
        n_valid=P, tile=tile, needs_mask=needs_mask)

    loss_parts, corr_parts = pl.pallas_call(
        kernel,
        out_shape=(jax.ShapeDtypeStruct((n_par, 1, 1), jnp.float32),
                   jax.ShapeDtypeStruct((n_par, 1, 1), jnp.float32)),
        grid_spec=pltpu.PrefetchScalarGridSpec(
            num_scalar_prefetch=0,
            grid=(n_par, n_inner),
            in_specs=in_specs,
            out_specs=(pl.BlockSpec((1, 1, 1), lambda ip, j: (ip, 0, 0)),
                       pl.BlockSpec((1, 1, 1), lambda ip, j: (ip, 0, 0))),
            scratch_shapes=[pltpu.VMEM((1, tile), jnp.float32),
                            pltpu.VMEM((1, tile), jnp.float32)]),
        compiler_params=pltpu.CompilerParams(
            dimension_semantics=("parallel", "arbitrary")),
    )(*inputs)

    loss_sum = jnp.sum(loss_parts)
    correct_sum = jnp.sum(corr_parts)

    focal_loss = loss_sum / P
    if dice:
        dice_loss = 1.0 - 2.0 * (correct_sum + dice_eps) / (2.0 * P + dice_eps)
        return focal_loss + dice_loss
    return focal_loss


def _reference_loss(pred, target, pred_choice, *, label_smoothing=0.0,
                    gamma=1, dice=True, dice_eps=1.0):
    B, N, C = pred.shape
    logits = pred.reshape(-1, C).astype(jnp.float32)
    tgt = target.reshape(-1)
    log_p = jax.nn.log_softmax(logits, axis=-1)
    onehot = jax.nn.one_hot(tgt, C, dtype=jnp.float32)
    q = (1.0 - label_smoothing) * onehot + label_smoothing / C
    ce = -jnp.sum(q * log_p, axis=-1)
    pn = jnp.exp(jnp.sum(onehot * log_p, axis=-1))
    focal = jnp.mean((1.0 - pn) ** gamma * ce)
    if not dice:
        return focal
    correct = jnp.sum((pred_choice.reshape(-1) == tgt).astype(jnp.float32))
    dl = 1.0 - 2.0 * (correct + dice_eps) / (2.0 * B * N + dice_eps)
    return focal + dl


if __name__ == "__main__":
    key = jax.random.PRNGKey(0)
    k1, k2, k3, k4 = jax.random.split(key, 4)

    B, N, C = 2, 256, 13                 # small PointNet-like sem-seg shapes
    pred = jax.random.normal(k1, (B, N, C), dtype=jnp.float32)
    target = jax.random.randint(k2, (B, N), 0, C, dtype=jnp.int32)
    pred_choice = jnp.argmax(pred, axis=-1).astype(jnp.int32)

    ref = _reference_loss(pred, target, pred_choice,
                          label_smoothing=0.0, gamma=1, dice=True, dice_eps=1.0)

    # fast path: argmax computed in-kernel (no second HBM pass over pred)
    loss_fast = jax.block_until_ready(
        pointnet_sem_seg_loss(pred, target, label_smoothing=0.0, gamma=1,
                              dice=True, dice_eps=1.0, weights=None))
    assert jnp.allclose(loss_fast, ref, atol=1e-5, rtol=1e-5), (loss_fast, ref)

    # module-faithful path: pred_choice supplied explicitly
    loss_mod = jax.block_until_ready(
        pointnet_sem_seg_loss(pred, target, pred_choice, label_smoothing=0.0,
                              gamma=1, dice=True, dice_eps=1.0, weights=None))
    assert jnp.allclose(loss_mod, ref, atol=1e-5, rtol=1e-5), (loss_mod, ref)

    # ragged point count: exercises tail padding + gated in-kernel validity mask
    N2 = 250
    pred2 = jax.random.normal(k3, (B, N2, C), dtype=jnp.float32)
    target2 = jax.random.randint(k4, (B, N2), 0, C, dtype=jnp.int32)
    choice2 = jnp.argmax(pred2, axis=-1).astype(jnp.int32)
    ref2 = _reference_loss(pred2, target2, choice2,
                           label_smoothing=0.0, gamma=1, dice=True, dice_eps=1.0)
    loss2 = jax.block_until_ready(pointnet_sem_seg_loss(pred2, target2))
    assert jnp.allclose(loss2, ref2, atol=1e-5, rtol=1e-5), (loss2, ref2)

    print("KERNEL_OK")
</pallas_src>

<mosaic_0001>
module attributes {stable_mosaic.version = 11 : i64} {
  func.func @_loss_kernel(%arg0: i32, %arg1: i32, %arg2: memref<13x512xf32, #tpu.memory_space<vmem>>, %arg3: memref<1x512xi32, #tpu.memory_space<vmem>>, %arg4: memref<1x1x1xf32, #tpu.memory_space<vmem>>, %arg5: memref<1x1x1xf32, #tpu.memory_space<vmem>>, %arg6: memref<1x512xf32, #tpu.memory_space<vmem>>, %arg7: memref<1x512xf32, #tpu.memory_space<vmem>>) attributes {dimension_semantics = [#tpu.dimension_semantics<parallel>, #tpu.dimension_semantics<arbitrary>], iteration_bounds = array<i64: 1, 1>, scalar_prefetch = 0 : i64, scratch_operands = 2 : i64, tpu.core_type = #tpu.core_type<tc>, window_params = [{transform_indices = @transform_0, window_bounds = array<i64: 13, 512>}, {transform_indices = @transform_1, window_bounds = array<i64: 1, 512>}, {transform_indices = @transform_2, window_bounds = array<i64: 1, 1, 1>}, {transform_indices = @transform_3, window_bounds = array<i64: 1, 1, 1>}]} {
    %c0_i32 = arith.constant 0 : i32
    %0 = arith.cmpi eq, %arg1, %c0_i32 : i32
    %1 = arith.extui %0 : i1 to i32
    %c0_i32_0 = arith.constant 0 : i32
    %2 = arith.cmpi ne, %1, %c0_i32_0 : i32
    scf.if %2 {
      %cst_19 = arith.constant 0.000000e+00 : f32
      %45 = vector.broadcast %cst_19 : f32 to vector<1x512xf32>
      %c0_20 = arith.constant 0 : index
      %c0_21 = arith.constant 0 : index
      %46 = vector.load %arg6[%c0_20, %c0_21] : memref<1x512xf32, #tpu.memory_space<vmem>>, vector<1x512xf32>
      tpu.vector_store %arg6[%c0_20, %c0_21], %45 {strides = array<i32>} : memref<1x512xf32, #tpu.memory_space<vmem>>, vector<1x512xf32>,
      %cst_22 = arith.constant 0.000000e+00 : f32
      %47 = vector.broadcast %cst_22 : f32 to vector<1x512xf32>
      %c0_23 = arith.constant 0 : index
      %c0_24 = arith.constant 0 : index
      %48 = vector.load %arg7[%c0_23, %c0_24] : memref<1x512xf32, #tpu.memory_space<vmem>>, vector<1x512xf32>
      tpu.vector_store %arg7[%c0_23, %c0_24], %47 {strides = array<i32>} : memref<1x512xf32, #tpu.memory_space<vmem>>, vector<1x512xf32>,
    } else {
    }
    %c0 = arith.constant 0 : index
    %c0_1 = arith.constant 0 : index
    %3 = vector.load %arg2[%c0, %c0_1] : memref<13x512xf32, #tpu.memory_space<vmem>>, vector<13x512xf32>
    %c0_2 = arith.constant 0 : index
    %c0_3 = arith.constant 0 : index
    %4 = vector.load %arg3[%c0_2, %c0_3] : memref<1x512xi32, #tpu.memory_space<vmem>>, vector<1x512xi32>
    %5 = tpu.iota {dimensions = array<i32: 0>} : vector<13x512xi32>
    %6 = vector.broadcast %4 : vector<1x512xi32> to vector<13x512xi32>
    %7 = arith.cmpi eq, %5, %6 : vector<13x512xi32>
    %cst = arith.constant dense<0xFF800000> : vector<512xf32>
    %8 = vector.multi_reduction <maximumf>, %3, %cst [0] : vector<13x512xf32> to vector<512xf32>
    %9 = vector.shape_cast %8 : vector<512xf32> to vector<1x512xf32>
    %10 = vector.broadcast %9 : vector<1x512xf32> to vector<13x512xf32>
    %11 = arith.subf %3, %10 : vector<13x512xf32>
    %12 = math.exp %11 : vector<13x512xf32>
    %cst_4 = arith.constant dense<0.000000e+00> : vector<512xf32>
    %13 = vector.multi_reduction <add>, %12, %cst_4 [0] : vector<13x512xf32> to vector<512xf32>
    %14 = vector.shape_cast %13 : vector<512xf32> to vector<1x512xf32>
    %15 = math.log %14 : vector<1x512xf32>
    %16 = arith.addf %9, %15 : vector<1x512xf32>
    %cst_5 = arith.constant 0.000000e+00 : f32
    %17 = vector.broadcast %cst_5 : f32 to vector<13x512xf32>
    %18 = arith.select %7, %3, %17 : vector<13x512xi1>, vector<13x512xf32>
    %cst_6 = arith.constant dense<0.000000e+00> : vector<512xf32>
    %19 = vector.multi_reduction <add>, %18, %cst_6 [0] : vector<13x512xf32> to vector<512xf32>
    %20 = vector.shape_cast %19 : vector<512xf32> to vector<1x512xf32>
    %21 = arith.subf %20, %16 : vector<1x512xf32>
    %22 = math.exp %21 : vector<1x512xf32>
    %23 = arith.subf %16, %20 : vector<1x512xf32>
    %cst_7 = arith.constant 1.000000e+00 : f32
    %24 = vector.broadcast %cst_7 : f32 to vector<1x512xf32>
    %25 = arith.subf %24, %22 : vector<1x512xf32>
    %26 = arith.mulf %25, %23 : vector<1x512xf32>
    %27 = vector.broadcast %9 : vector<1x512xf32> to vector<13x512xf32>
    %28 = arith.cmpf oeq, %3, %27 : vector<13x512xf32>
    %c13_i32 = arith.constant 13 : i32
    %29 = vector.broadcast %c13_i32 : i32 to vector<13x512xi32>
    %30 = arith.select %28, %5, %29 : vector<13x512xi1>, vector<13x512xi32>
    %cst_8 = arith.constant dense<2147483647> : vector<512xi32>
    %31 = vector.multi_reduction <minsi>, %30, %cst_8 [0] : vector<13x512xi32> to vector<512xi32>
    %32 = vector.shape_cast %31 : vector<512xi32> to vector<1x512xi32>
    %33 = arith.cmpi eq, %32, %4 : vector<1x512xi32>
    %34 = arith.extui %33 : vector<1x512xi1> to vector<1x512xi32>
    %35 = arith.sitofp %34 : vector<1x512xi32> to vector<1x512xf32>
    %c0_9 = arith.constant 0 : index
    %c0_10 = arith.constant 0 : index
    %36 = vector.load %arg6[%c0_9, %c0_10] : memref<1x512xf32, #tpu.memory_space<vmem>>, vector<1x512xf32>
    %37 = arith.addf %36, %26 : vector<1x512xf32>
    %c0_11 = arith.constant 0 : index
    %c0_12 = arith.constant 0 : index
    %38 = vector.load %arg6[%c0_11, %c0_12] : memref<1x512xf32, #tpu.memory_space<vmem>>, vector<1x512xf32>
    tpu.vector_store %arg6[%c0_11, %c0_12], %37 {strides = array<i32>} : memref<1x512xf32, #tpu.memory_space<vmem>>, vector<1x512xf32>,
    %c0_13 = arith.constant 0 : index
    %c0_14 = arith.constant 0 : index
    %39 = vector.load %arg7[%c0_13, %c0_14] : memref<1x512xf32, #tpu.memory_space<vmem>>, vector<1x512xf32>
    %40 = arith.addf %39, %35 : vector<1x512xf32>
    %c0_15 = arith.constant 0 : index
    %c0_16 = arith.constant 0 : index
    %41 = vector.load %arg7[%c0_15, %c0_16] : memref<1x512xf32, #tpu.memory_space<vmem>>, vector<1x512xf32>
    tpu.vector_store %arg7[%c0_15, %c0_16], %40 {strides = array<i32>} : memref<1x512xf32, #tpu.memory_space<vmem>>, vector<1x512xf32>,
    %c0_i32_17 = arith.constant 0 : i32
    %42 = arith.cmpi eq, %arg1, %c0_i32_17 : i32
    %43 = arith.extui %42 : i1 to i32
    %c0_i32_18 = arith.constant 0 : i32
    %44 = arith.cmpi ne, %43, %c0_i32_18 : i32
    scf.if %44 {
      %c0_19 = arith.constant 0 : index
      %c0_20 = arith.constant 0 : index
      %45 = vector.load %arg6[%c0_19, %c0_20] : memref<1x512xf32, #tpu.memory_space<vmem>>, vector<1x512xf32>
      %46 = vector.shape_cast %45 : vector<1x512xf32> to vector<1x1x512xf32>
      %cst_21 = arith.constant dense<0.000000e+00> : vector<1xf32>
      %47 = vector.multi_reduction <add>, %46, %cst_21 [1, 2] : vector<1x1x512xf32> to vector<1xf32>
      %48 = vector.shape_cast %47 : vector<1xf32> to vector<1x1x1xf32>
      %49 = vector.extract %48[0, 0, 0] : f32 from vector<1x1x1xf32>
      %50 = vector.broadcast %49 : f32 to vector<1x1x1xf32>
      %c0_22 = arith.constant 0 : index
      %c0_23 = arith.constant 0 : index
      %c0_24 = arith.constant 0 : index
      %51 = vector.load %arg4[%c0_22, %c0_23, %c0_24] : memref<1x1x1xf32, #tpu.memory_space<vmem>>, vector<1x1x1xf32>
      tpu.vector_store %arg4[%c0_22, %c0_23, %c0_24], %50 {strides = array<i32>} : memref<1x1x1xf32, #tpu.memory_space<vmem>>, vector<1x1x1xf32>,
      %c0_25 = arith.constant 0 : index
      %c0_26 = arith.constant 0 : index
      %52 = vector.load %arg7[%c0_25, %c0_26] : memref<1x512xf32, #tpu.memory_space<vmem>>, vector<1x512xf32>
      %53 = vector.shape_cast %52 : vector<1x512xf32> to vector<1x1x512xf32>
      %cst_27 = arith.constant dense<0.000000e+00> : vector<1xf32>
      %54 = vector.multi_reduction <add>, %53, %cst_27 [1, 2] : vector<1x1x512xf32> to vector<1xf32>
      %55 = vector.shape_cast %54 : vector<1xf32> to vector<1x1x1xf32>
      %56 = vector.extract %55[0, 0, 0] : f32 from vector<1x1x1xf32>
      %57 = vector.broadcast %56 : f32 to vector<1x1x1xf32>
      %c0_28 = arith.constant 0 : index
      %c0_29 = arith.constant 0 : index
      %c0_30 = arith.constant 0 : index
      %58 = vector.load %arg5[%c0_28, %c0_29, %c0_30] : memref<1x1x1xf32, #tpu.memory_space<vmem>>, vector<1x1x1xf32>
      tpu.vector_store %arg5[%c0_28, %c0_29, %c0_30], %57 {strides = array<i32>} : memref<1x1x1xf32, #tpu.memory_space<vmem>>, vector<1x1x1xf32>,
    } else {
    }
    return
  }
  func.func @transform_0(%arg0: i32, %arg1: i32) -> (i32, i32) {
    %c1_i32 = arith.constant 1 : i32
    %0 = arith.muli %arg0, %c1_i32 : i32
    %1 = arith.addi %0, %arg1 : i32
    %c0_i32 = arith.constant 0 : i32
    %c0_i32_0 = arith.constant 0 : i32
    return %c0_i32, %1 : i32, i32
  }
  func.func @transform_1(%arg0: i32, %arg1: i32) -> (i32, i32) {
    %c1_i32 = arith.constant 1 : i32
    %0 = arith.muli %arg0, %c1_i32 : i32
    %1 = arith.addi %0, %arg1 : i32
    %c0_i32 = arith.constant 0 : i32
    %c0_i32_0 = arith.constant 0 : i32
    return %c0_i32, %1 : i32, i32
  }
  func.func @transform_2(%arg0: i32, %arg1: i32) -> (i32, i32, i32) {
    %c0_i32 = arith.constant 0 : i32
    %c0_i32_0 = arith.constant 0 : i32
    %c0_i32_1 = arith.constant 0 : i32
    return %arg0, %c0_i32, %c0_i32_0 : i32, i32, i32
  }
  func.func @transform_3(%arg0: i32, %arg1: i32) -> (i32, i32, i32) {
    %c0_i32 = arith.constant 0 : i32
    %c0_i32_0 = arith.constant 0 : i32
    %c0_i32_1 = arith.constant 0 : i32
    return %arg0, %c0_i32, %c0_i32_0 : i32, i32, i32
  }
}

</mosaic_0001>

<llo_original>
// kernel: tpu_custom_call.1
$region0: #{tpu_custom_call.1}
  #allocation0 [shape = 'u32[]', space=smem, size = 0x4, offset = 0x4, fixed_abs, tag = 'smem constant byte address 0x4 - core index']
  #allocation1 [shape = 'u32[144,128]{1,0:T(1,128)}', space=vmem, size = 0x12000, scoped, tag = 'internal scratch']
  #allocation2 [shape = 'f32[1,512]{1,0:T(1,128)}', space=vmem, size = 0x800, scoped, tag = 'scratch operand']
  #allocation3 [shape = 'f32[1,512]{1,0:T(1,128)}', space=vmem, size = 0x800, scoped, tag = 'scratch operand']
  %s0 = inlined_call_operand.hbm [shape: f32[13,512], index: 0, kind: input, shape index: {}]
  %s1 = inlined_call_operand.hbm [shape: s32[1,512], index: 1, kind: input, shape index: {}]
  %s2 = inlined_call_operand.hbm [shape: f32[1,1,1], index: 2, kind: output, shape index: {0}]
  %s3 = inlined_call_operand.hbm [shape: f32[1,1,1], index: 3, kind: output, shape index: {1}]
  %4 = xla_tuple %s2, %s3
  %s5 = sld [smem:[#allocation0]]
  $region42: #{tpu_custom_call.1} parent=0
    _
  %s7 = ssub.s32 1, %s5
  %s8 = scalar_select 0, %s7, %s5
  $region1: #{tpu_custom_call.1} parent=0
    #allocation4 [shape = 'u8[32768]{0}', space=vmem, size = 0x8000, scoped, tag = 'input window, operand 0, single buffered']
    #allocation5 [shape = 's32[1]{0}', space=sflag, size = 0x4, scoped, tag = 'scoped memory for tpu_custom_call.1']
    #allocation6 [shape = 's32[1]{0}', space=sflag, size = 0x4, scoped, tag = 'scoped memory for tpu_custom_call.1']
    #allocation7 [shape = 'u8[2048]{0}', space=vmem, size = 0x800, scoped, tag = 'input window, operand 1, single buffered']
    #allocation8 [shape = 's32[1]{0}', space=sflag, size = 0x4, scoped, tag = 'scoped memory for tpu_custom_call.1']
    #allocation9 [shape = 'u8[512]{0}', space=vmem, size = 0x400, scoped, tag = 'output window, operand 0, single buffered']
    #allocation10 [shape = 'u8[512]{0}', space=vmem, size = 0x400, scoped, tag = 'output window, operand 1, single buffered']
    #allocation11 [shape = 's32[1]{0}', space=sflag, size = 0x4, scoped, tag = 'scoped memory for tpu_custom_call.1']
    %9 = vsyncpa [#allocation5], 0
    %10 = vsyncpa [#allocation8], 0
    %11 = vsyncpa [#allocation6], 0
    %12 = vsyncpa [#allocation11], 0
    // Predicated region
    $region2: #{tpu_custom_call.1} parent=1 // pred_check
      _
    $region3: #{tpu_custom_call.1} parent=1 // pred_check_branch
      %14 = sbr.rel (0) target = $region5
    $region4: #{tpu_custom_call.1} parent=1 // pred_region
      %s15 = sadd.s32 0, 0
      %s16 = smul.u32 4, %s15
      %s18 = ssub.s32 1024, 1024
      %19 = vsyncadd [#allocation5], %s18
      %s20 = smul.addr %s16, 128
      %s21 = scalar_lea.hbm %s0, %s20
      %s22 = sshll.u32 [#allocation4], 4
      %s23 = int_to_ptr.vmem [resolvable:$true] %s22
      %28 = dma.hbm_to_vmem [thread:$0]  %s21, 1024, %s23, [#allocation5], 512, 512, 32
    $region5: #{tpu_custom_call.1} parent=1 // pred_fallthru
      _
    // Predicated region
    $region6: #{tpu_custom_call.1} parent=1 // pred_check
      _
    $region7: #{tpu_custom_call.1} parent=1 // pred_check_branch
      %30 = sbr.rel (0) target = $region9
    $region8: #{tpu_custom_call.1} parent=1 // pred_region
      %s31 = sadd.s32 0, 0
      %s32 = smul.u32 4, %s31
      %s34 = ssub.s32 64, 64
      %35 = vsyncadd [#allocation8], %s34
      %s36 = smul.addr %s32, 16
      %s37 = scalar_lea.hbm %s1, %s36
      %s39 = sshll.u32 [#allocation7], 4
      %s40 = int_to_ptr.vmem [resolvable:$true] %s39
      %42 = dma.hbm_to_vmem [thread:$0]  %s37, 64, %s40, [#allocation8]
    $region9: #{tpu_custom_call.1} parent=1 // pred_fallthru
      _
    // Predicated region
    $region10: #{tpu_custom_call.1} parent=1 // pred_check
      _
    $region11: #{tpu_custom_call.1} parent=1 // pred_check_branch
      %44 = sbr.rel (0) target = $region13
    $region12: #{tpu_custom_call.1} parent=1 // pred_region
      %45 = dma.done [#allocation5], 1024
    $region13: #{tpu_custom_call.1} parent=1 // pred_fallthru
      _
    // Predicated region
    $region14: #{tpu_custom_call.1} parent=1 // pred_check
      _
    $region15: #{tpu_custom_call.1} parent=1 // pred_check_branch
      %47 = sbr.rel (0) target = $region17
    $region16: #{tpu_custom_call.1} parent=1 // pred_region
      %48 = dma.done [#allocation8], 64
    $region17: #{tpu_custom_call.1} parent=1 // pred_fallthru
      _
    %s49 = sadd.s32 0, 0
    %s50 = smul.u32 4, %s49
    %s51 = sadd.s32 0, 0
    %s52 = smul.u32 4, %s51
    %p53 = scmp.eq.s32.totalorder 0, 0
    // Predicated region
    $region18: #{tpu_custom_call.1} parent=1 // pred_check
      %p54 = pneg %p53
    $region19: #{tpu_custom_call.1} parent=1 // pred_check_branch
      %56 = sbr.rel (%p54) target = $region21
    $region20: #{tpu_custom_call.1} parent=1 // pred_region
      %v57 = vlaneseq
      %vm58 = vcmp.ge.s32.totalorder %v57, 0
      %vm59 = vcmp.lt.s32.totalorder %v57, 512
      %vm60 = vmand %vm58, %vm59
      %61 = vst.msk [vmem:[#allocation2] sm:$0xf] %vm60, 0.0
      %62 = vst.msk [vmem:[#allocation3] sm:$0xf] %vm60, 0.0
    $region21: #{tpu_custom_call.1} parent=1 // pred_fallthru
      _
    %v63 = vld [vmem:[#allocation4] sm:$0xff]
    %v64 = vld [vmem:[#allocation4 + $0x8] sm:$0xff]
    %v65 = vld [vmem:[#allocation4 + $0x10] sm:$0xff]
    %v66 = vld [vmem:[#allocation4 + $0x18] sm:$0xff]
    %v67 = vld [vmem:[#allocation4 + $0x20] sm:$0x1f]
    %v68 = vld [vmem:[#allocation4 + $0x28] sm:$0x1f]
    %v69 = vld [vmem:[#allocation4 + $0x30] sm:$0x1f]
    %v70 = vld [vmem:[#allocation4 + $0x38] sm:$0x1f]
    %v71 = vld [vmem:[#allocation7] sm:$0xf]
    %v72 = vlaneseq
    %v73 = vshrl.u32 %v72, 7
    %v74 = vadd.s32 %v73, 8
    %v75 = vlaneseq
    %v76 = vshrl.u32 %v75, 7
    %v77 = vsub.s32 0, %v76
    %v78 = vrot.slane %v71, %v77
    %v79 = vlaneseq
    %v80 = vshrl.u32 %v79, 7
    %v81 = vsub.s32 1, %v80
    %v82 = vrot.slane %v71, %v81
    %v83 = vlaneseq
    %v84 = vshrl.u32 %v83, 7
    %v85 = vsub.s32 2, %v84
    %v86 = vrot.slane %v71, %v85
    %v87 = vlaneseq
    %v88 = vshrl.u32 %v87, 7
    %v89 = vsub.s32 3, %v88
    %v90 = vrot.slane %v71, %v89
    %vm91 = vcmp.eq.s32.totalorder %v73, %v78
    %vm92 = vcmp.eq.s32.totalorder %v73, %v82
    %vm93 = vcmp.eq.s32.totalorder %v73, %v86
    %vm94 = vcmp.eq.s32.totalorder %v73, %v90
    %vm95 = vcmp.eq.s32.totalorder %v74, %v78
    %vm96 = vcmp.eq.s32.totalorder %v74, %v82
    %vm97 = vcmp.eq.s32.totalorder %v74, %v86
    %vm98 = vcmp.eq.s32.totalorder %v74, %v90
    %vm99 = vcmask 1044480
    %v100 = vsel %vm99, %v67, -inf
    %v101 = vmax.f32 %v63, %v100
    %v102 = vrot.slane %v101, 4
    %v103 = vmax.f32 %v101, %v102
    %v104 = vrot.slane %v103, 2
    %v105 = vmax.f32 %v103, %v104
    %v106 = vrot.slane %v105, 1
    %v107 = vmax.f32 %v105, %v106
    %v108 = vsel %vm99, %v68, -inf
    %v109 = vmax.f32 %v64, %v108
    %v110 = vrot.slane %v109, 4
    %v111 = vmax.f32 %v109, %v110
    %v112 = vrot.slane %v111, 2
    %v113 = vmax.f32 %v111, %v112
    %v114 = vrot.slane %v113, 1
    %v115 = vmax.f32 %v113, %v114
    %v116 = vsel %vm99, %v69, -inf
    %v117 = vmax.f32 %v65, %v116
    %v118 = vrot.slane %v117, 4
    %v119 = vmax.f32 %v117, %v118
    %v120 = vrot.slane %v119, 2
    %v121 = vmax.f32 %v119, %v120
    %v122 = vrot.slane %v121, 1
    %v123 = vmax.f32 %v121, %v122
    %v124 = vsel %vm99, %v70, -inf
    %v125 = vmax.f32 %v66, %v124
    %v126 = vrot.slane %v125, 4
    %v127 = vmax.f32 %v125, %v126
    %v128 = vrot.slane %v127, 2
    %v129 = vmax.f32 %v127, %v128
    %v130 = vrot.slane %v129, 1
    %v131 = vmax.f32 %v129, %v130
    %v132 = vsub.f32 %v63, %v107
    %v133 = vsub.f32 %v64, %v115
    %v134 = vsub.f32 %v65, %v123
    %v135 = vsub.f32 %v66, %v131
    %v136 = vsub.f32 %v67, %v107
    %v137 = vsub.f32 %v68, %v115
    %v138 = vsub.f32 %v69, %v123
    %v139 = vsub.f32 %v70, %v131
    %v140 = vmul.f32 %v132, 1.442695
    %v141 = vpow.pop %v140
    %v142 = vmul.f32 %v133, 1.442695
    %v143 = vpow.pop %v142
    %v144 = vmul.f32 %v134, 1.442695
    %v145 = vpow.pop %v144
    %v146 = vmul.f32 %v135, 1.442695
    %v147 = vpow.pop %v146
    %v148 = vmul.f32 %v136, 1.442695
    %v149 = vpow.pop %v148
    %v150 = vmul.f32 %v137, 1.442695
    %v151 = vpow.pop %v150
    %v152 = vmul.f32 %v138, 1.442695
    %v153 = vpow.pop %v152
    %v154 = vmul.f32 %v139, 1.442695
    %v155 = vpow.pop %v154
    %v156 = vsel %vm99, %v149, 0.0
    %v157 = vadd.f32 %v141, %v156
    %v158 = vrot.slane %v157, 4
    %v159 = vadd.f32 %v157, %v158
    %v160 = vrot.slane %v159, 2
    %v161 = vadd.f32 %v159, %v160
    %v162 = vrot.slane %v161, 1
    %v163 = vadd.f32 %v161, %v162
    %v164 = vsel %vm99, %v151, 0.0
    %v165 = vadd.f32 %v143, %v164
    %v166 = vrot.slane %v165, 4
    %v167 = vadd.f32 %v165, %v166
    %v168 = vrot.slane %v167, 2
    %v169 = vadd.f32 %v167, %v168
    %v170 = vrot.slane %v169, 1
    %v171 = vadd.f32 %v169, %v170
    %v172 = vsel %vm99, %v153, 0.0
    %v173 = vadd.f32 %v145, %v172
    %v174 = vrot.slane %v173, 4
    %v175 = vadd.f32 %v173, %v174
    %v176 = vrot.slane %v175, 2
    %v177 = vadd.f32 %v175, %v176
    %v178 = vrot.slane %v177, 1
    %v179 = vadd.f32 %v177, %v178
    %v180 = vsel %vm99, %v155, 0.0
    %v181 = vadd.f32 %v147, %v180
    %v182 = vrot.slane %v181, 4
    %v183 = vadd.f32 %v181, %v182
    %v184 = vrot.slane %v183, 2
    %v185 = vadd.f32 %v183, %v184
    %v186 = vrot.slane %v185, 1
    %v187 = vadd.f32 %v185, %v186
    %v188 = vlog2.pop %v163
    %v189 = vmul.f32 %v188, 0.6931472
    %v190 = vlog2.pop %v171
    %v191 = vmul.f32 %v190, 0.6931472
    %v192 = vlog2.pop %v179
    %v193 = vmul.f32 %v192, 0.6931472
    %v194 = vlog2.pop %v187
    %v195 = vmul.f32 %v194, 0.6931472
    %v196 = vadd.f32 %v107, %v189
    %v197 = vadd.f32 %v115, %v191
    %v198 = vadd.f32 %v123, %v193
    %v199 = vadd.f32 %v131, %v195
    %v200 = vsel %vm91, %v63, 0.0
    %v201 = vsel %vm92, %v64, 0.0
    %v202 = vsel %vm93, %v65, 0.0
    %v203 = vsel %vm94, %v66, 0.0
    %v204 = vsel %vm95, %v67, 0.0
    %v205 = vsel %vm96, %v68, 0.0
    %v206 = vsel %vm97, %v69, 0.0
    %v207 = vsel %vm98, %v70, 0.0
    %v208 = vsel %vm99, %v204, 0.0
    %v209 = vadd.f32 %v200, %v208
    %v210 = vrot.slane %v209, 4
    %v211 = vadd.f32 %v209, %v210
    %v212 = vrot.slane %v211, 2
    %v213 = vadd.f32 %v211, %v212
    %v214 = vrot.slane %v213, 1
    %v215 = vadd.f32 %v213, %v214
    %v216 = vsel %vm99, %v205, 0.0
    %v217 = vadd.f32 %v201, %v216
    %v218 = vrot.slane %v217, 4
    %v219 = vadd.f32 %v217, %v218
    %v220 = vrot.slane %v219, 2
    %v221 = vadd.f32 %v219, %v220
    %v222 = vrot.slane %v221, 1
    %v223 = vadd.f32 %v221, %v222
    %v224 = vsel %vm99, %v206, 0.0
    %v225 = vadd.f32 %v202, %v224
    %v226 = vrot.slane %v225, 4
    %v227 = vadd.f32 %v225, %v226
    %v228 = vrot.slane %v227, 2
    %v229 = vadd.f32 %v227, %v228
    %v230 = vrot.slane %v229, 1
    %v231 = vadd.f32 %v229, %v230
    %v232 = vsel %vm99, %v207, 0.0
    %v233 = vadd.f32 %v203, %v232
    %v234 = vrot.slane %v233, 4
    %v235 = vadd.f32 %v233, %v234
    %v236 = vrot.slane %v235, 2
    %v237 = vadd.f32 %v235, %v236
    %v238 = vrot.slane %v237, 1
    %v239 = vadd.f32 %v237, %v238
    %v240 = vsub.f32 %v215, %v196
    %v241 = vsub.f32 %v223, %v197
    %v242 = vsub.f32 %v231, %v198
    %v243 = vsub.f32 %v239, %v199
    %v244 = vmul.f32 %v240, 1.442695
    %v245 = vpow.pop %v244
    %v246 = vmul.f32 %v241, 1.442695
    %v247 = vpow.pop %v246
    %v248 = vmul.f32 %v242, 1.442695
    %v249 = vpow.pop %v248
    %v250 = vmul.f32 %v243, 1.442695
    %v251 = vpow.pop %v250
    %v252 = vsub.f32 %v196, %v215
    %v253 = vsub.f32 %v197, %v223
    %v254 = vsub.f32 %v198, %v231
    %v255 = vsub.f32 %v199, %v239
    %v256 = vsub.f32 1.0, %v245
    %v257 = vsub.f32 1.0, %v247
    %v258 = vsub.f32 1.0, %v249
    %v259 = vsub.f32 1.0, %v251
    %v260 = vmul.f32 %v256, %v252
    %v261 = vmul.f32 %v257, %v253
    %v262 = vmul.f32 %v258, %v254
    %v263 = vmul.f32 %v259, %v255
    %vm264 = vcmp.eq.f32.partialorder %v63, %v107
    %vm265 = vcmp.eq.f32.partialorder %v64, %v115
    %vm266 = vcmp.eq.f32.partialorder %v65, %v123
    %vm267 = vcmp.eq.f32.partialorder %v66, %v131
    %vm268 = vcmp.eq.f32.partialorder %v67, %v107
    %vm269 = vcmp.eq.f32.partialorder %v68, %v115
    %vm270 = vcmp.eq.f32.partialorder %v69, %v123
    %vm271 = vcmp.eq.f32.partialorder %v70, %v131
    %v272 = vsel %vm264, %v73, 13
    %v273 = vsel %vm265, %v73, 13
    %v274 = vsel %vm266, %v73, 13
    %v275 = vsel %vm267, %v73, 13
    %v276 = vsel %vm268, %v74, 13
    %v277 = vsel %vm269, %v74, 13
    %v278 = vsel %vm270, %v74, 13
    %v279 = vsel %vm271, %v74, 13
    %v280 = vsel %vm99, %v276, 2147483647
    %vm281 = vcmp.lt.s32.totalorder %v272, %v280
    %v282 = vsel %vm281, %v272, %v280
    %v283 = vrot.slane %v282, 4
    %vm284 = vcmp.lt.s32.totalorder %v282, %v283
    %v285 = vsel %vm284, %v282, %v283
    %v286 = vrot.slane %v285, 2
    %vm287 = vcmp.lt.s32.totalorder %v285, %v286
    %v288 = vsel %vm287, %v285, %v286
    %v289 = vrot.slane %v288, 1
    %vm290 = vcmp.lt.s32.totalorder %v288, %v289
    %v291 = vsel %vm290, %v288, %v289
    %v292 = vsel %vm99, %v277, 2147483647
    %vm293 = vcmp.lt.s32.totalorder %v273, %v292
    %v294 = vsel %vm293, %v273, %v292
    %v295 = vrot.slane %v294, 4
    %vm296 = vcmp.lt.s32.totalorder %v294, %v295
    %v297 = vsel %vm296, %v294, %v295
    %v298 = vrot.slane %v297, 2
    %vm299 = vcmp.lt.s32.totalorder %v297, %v298
    %v300 = vsel %vm299, %v297, %v298
    %v301 = vrot.slane %v300, 1
    %vm302 = vcmp.lt.s32.totalorder %v300, %v301
    %v303 = vsel %vm302, %v300, %v301
    %v304 = vsel %vm99, %v278, 2147483647
    %vm305 = vcmp.lt.s32.totalorder %v274, %v304
    %v306 = vsel %vm305, %v274, %v304
    %v307 = vrot.slane %v306, 4
    %vm308 = vcmp.lt.s32.totalorder %v306, %v307
    %v309 = vsel %vm308, %v306, %v307
    %v310 = vrot.slane %v309, 2
    %vm311 = vcmp.lt.s32.totalorder %v309, %v310
    %v312 = vsel %vm311, %v309, %v310
    %v313 = vrot.slane %v312, 1
    %vm314 = vcmp.lt.s32.totalorder %v312, %v313
    %v315 = vsel %vm314, %v312, %v313
    %v316 = vsel %vm99, %v279, 2147483647
    %vm317 = vcmp.lt.s32.totalorder %v275, %v316
    %v318 = vsel %vm317, %v275, %v316
    %v319 = vrot.slane %v318, 4
    %vm320 = vcmp.lt.s32.totalorder %v318, %v319
    %v321 = vsel %vm320, %v318, %v319
    %v322 = vrot.slane %v321, 2
    %vm323 = vcmp.lt.s32.totalorder %v321, %v322
    %v324 = vsel %vm323, %v321, %v322
    %v325 = vrot.slane %v324, 1
    %vm326 = vcmp.lt.s32.totalorder %v324, %v325
    %v327 = vsel %vm326, %v324, %v325
    %vm328 = vcmp.eq.s32.totalorder %v291, %v78
    %vm329 = vcmp.eq.s32.totalorder %v303, %v82
    %vm330 = vcmp.eq.s32.totalorder %v315, %v86
    %vm331 = vcmp.eq.s32.totalorder %v327, %v90
    %v332 = vsel %vm328, 1, 0
    %v333 = vsel %vm329, 1, 0
    %v334 = vsel %vm330, 1, 0
    %v335 = vsel %vm331, 1, 0
    %v336 = vcvt.s32.f32 %v332
    %v337 = vcvt.s32.f32 %v333
    %v338 = vcvt.s32.f32 %v334
    %v339 = vcvt.s32.f32 %v335
    %v340 = vld [vmem:[#allocation2] sm:$0xf]
    %v345 = vcombine.low %v260, %v261
    %v346 = vcombine.low %v262, %v263
    %v348 = vunpack.c.l.s4 1966171168
    %v349 = vunpack.c.0.s8 %v348
    %v350 = vlaneseq
    %v351 = vshrl.u32 %v350, 7
    %v352 = vsub.s32 %v349, %v351
    %v353 = vrot.slane %v345, %v352
    %v355 = vunpack.c.l.s4 1966171168
    %v356 = vunpack.c.0.s8 %v355
    %v357 = vlaneseq
    %v358 = vshrl.u32 %v357, 7
    %v359 = vsub.s32 %v356, %v358
    %v360 = vrot.slane %v346, %v359
    %v361 = vcombine.low %v353, %v360
    %v363 = vunpack.c.l.s4 1966171168
    %v364 = vunpack.c.0.s8 %v363
    %v365 = vlaneseq
    %v366 = vshrl.u32 %v365, 7
    %v367 = vsub.s32 %v364, %v366
    %v368 = vrot.slane %v361, %v367
    %v370 = vadd.f32 %v340, %v368
    %v371 = vlaneseq
    %vm372 = vcmp.ge.s32.totalorder %v371, 0
    %vm373 = vcmp.lt.s32.totalorder %v371, 512
    %vm374 = vmand %vm372, %vm373
    %375 = vst.msk [vmem:[#allocation2] sm:$0xf] %vm374, %v370
    %v376 = vld [vmem:[#allocation3] sm:$0xf]
    %v381 = vcombine.low %v336, %v337
    %v382 = vcombine.low %v338, %v339
    %v384 = vunpack.c.l.s4 1966171168
    %v385 = vunpack.c.0.s8 %v384
    %v386 = vlaneseq
    %v387 = vshrl.u32 %v386, 7
    %v388 = vsub.s32 %v385, %v387
    %v389 = vrot.slane %v381, %v388
    %v391 = vunpack.c.l.s4 1966171168
    %v392 = vunpack.c.0.s8 %v391
    %v393 = vlaneseq
    %v394 = vshrl.u32 %v393, 7
    %v395 = vsub.s32 %v392, %v394
    %v396 = vrot.slane %v382, %v395
    %v397 = vcombine.low %v389, %v396
    %v399 = vunpack.c.l.s4 1966171168
    %v400 = vunpack.c.0.s8 %v399
    %v401 = vlaneseq
    %v402 = vshrl.u32 %v401, 7
    %v403 = vsub.s32 %v400, %v402
    %v404 = vrot.slane %v397, %v403
    %v406 = vadd.f32 %v376, %v404
    %407 = vst.msk [vmem:[#allocation3] sm:$0xf] %vm374, %v406
    // Predicated region
    $region22: #{tpu_custom_call.1} parent=1 // pred_check
      %p408 = pneg %p53
    $region23: #{tpu_custom_call.1} parent=1 // pred_check_branch
      %410 = sbr.rel (%p408) target = $region25
    $region24: #{tpu_custom_call.1} parent=1 // pred_region
      %v411 = vld [vmem:[#allocation2] sm:$0xf]
      %v413 = vlaneseq
      %v414 = vshrl.u32 %v413, 7
      %v415 = vsub.s32 0, %v414
      %v416 = vrot.slane %v411, %v415
      %v417 = vlaneseq
      %v418 = vshrl.u32 %v417, 7
      %v419 = vsub.s32 1, %v418
      %v420 = vrot.slane %v411, %v419
      %v421 = vlaneseq
      %v422 = vshrl.u32 %v421, 7
      %v423 = vsub.s32 2, %v422
      %v424 = vrot.slane %v411, %v423
      %v425 = vlaneseq
      %v426 = vshrl.u32 %v425, 7
      %v427 = vsub.s32 3, %v426
      %v428 = vrot.slane %v411, %v427
      %vm433 = vcmask 1040384
      %v434 = vsel %vm433, %v416, 0.0
      %v435 = vsel %vm433, %v420, 0.0
      %v436 = vadd.f32 %v434, %v435
      %v437 = vsel %vm433, %v424, 0.0
      %v438 = vadd.f32 %v436, %v437
      %v439 = vsel %vm433, %v428, 0.0
      %v440 = vadd.f32 %v438, %v439
      %441 = vadd.xlane.f32.xlu0 %v440
      %v442 = vpop.xlane.xlu0 %441
      %v443 = vrot.slane %v442, 4
      %v444 = vadd.f32 %v442, %v443
      %v445 = vrot.slane %v444, 2
      %v446 = vadd.f32 %v444, %v445
      %v447 = vrot.slane %v446, 1
      %v448 = vadd.f32 %v446, %v447
      %s449 = vtos %v448
      %v450 = vstv %s449
      %vm451 = vcmask 0
      %452 = vst.msk [vmem:[#allocation9] sm:$0x1] %vm451, %v450
      %v453 = vld [vmem:[#allocation3] sm:$0xf]
      %v455 = vlaneseq
      %v456 = vshrl.u32 %v455, 7
      %v457 = vsub.s32 0, %v456
      %v458 = vrot.slane %v453, %v457
      %v459 = vlaneseq
      %v460 = vshrl.u32 %v459, 7
      %v461 = vsub.s32 1, %v460
      %v462 = vrot.slane %v453, %v461
      %v463 = vlaneseq
      %v464 = vshrl.u32 %v463, 7
      %v465 = vsub.s32 2, %v464
      %v466 = vrot.slane %v453, %v465
      %v467 = vlaneseq
      %v468 = vshrl.u32 %v467, 7
      %v469 = vsub.s32 3, %v468
      %v470 = vrot.slane %v453, %v469
      %v475 = vsel %vm433, %v458, 0.0
      %v476 = vsel %vm433, %v462, 0.0
      %v477 = vadd.f32 %v475, %v476
      %v478 = vsel %vm433, %v466, 0.0
      %v479 = vadd.f32 %v477, %v478
      %v480 = vsel %vm433, %v470, 0.0
      %v481 = vadd.f32 %v479, %v480
      %482 = vadd.xlane.f32.xlu0 %v481
      %v483 = vpop.xlane.xlu0 %482
      %v484 = vrot.slane %v483, 4
      %v485 = vadd.f32 %v483, %v484
      %v486 = vrot.slane %v485, 2
      %v487 = vadd.f32 %v485, %v486
      %v488 = vrot.slane %v487, 1
      %v489 = vadd.f32 %v487, %v488
      %s490 = vtos %v489
      %v491 = vstv %s490
      %492 = vst.msk [vmem:[#allocation10] sm:$0x1] %vm451, %v491
    $region25: #{tpu_custom_call.1} parent=1 // pred_fallthru
      _
    // Predicated region
    $region26: #{tpu_custom_call.1} parent=1 // pred_check
      _
    $region27: #{tpu_custom_call.1} parent=1 // pred_check_branch
      %494 = sbr.rel (0) target = $region29
    $region28: #{tpu_custom_call.1} parent=1 // pred_region
      %s496 = ssub.s32 16, 16
      %497 = vsyncadd [#allocation6], %s496
      %s499 = sshll.u32 [#allocation9], 4
      %s500 = int_to_ptr.vmem [resolvable:$true] %s499
      %502 = dma.vmem_to_hbm [thread:$0]  %s500, 16, %s2, [#allocation6]
    $region29: #{tpu_custom_call.1} parent=1 // pred_fallthru
      _
    // Predicated region
    $region30: #{tpu_custom_call.1} parent=1 // pred_check
      _
    $region31: #{tpu_custom_call.1} parent=1 // pred_check_branch
      %504 = sbr.rel (0) target = $region33
    $region32: #{tpu_custom_call.1} parent=1 // pred_region
      %s506 = ssub.s32 16, 16
      %507 = vsyncadd [#allocation11], %s506
      %s509 = sshll.u32 [#allocation10], 4
      %s510 = int_to_ptr.vmem [resolvable:$true] %s509
      %512 = dma.vmem_to_hbm [thread:$0]  %s510, 16, %s3, [#allocation11]
    $region33: #{tpu_custom_call.1} parent=1 // pred_fallthru
      _
    // Predicated region
    $region34: #{tpu_custom_call.1} parent=1 // pred_check
      _
    $region35: #{tpu_custom_call.1} parent=1 // pred_check_branch
      %514 = sbr.rel (0) target = $region37
    $region36: #{tpu_custom_call.1} parent=1 // pred_region
      %515 = dma.done [#allocation6], 16
    $region37: #{tpu_custom_call.1} parent=1 // pred_fallthru
      _
    // Predicated region
    $region38: #{tpu_custom_call.1} parent=1 // pred_check
      _
    $region39: #{tpu_custom_call.1} parent=1 // pred_check_branch
      %517 = sbr.rel (0) target = $region41
    $region40: #{tpu_custom_call.1} parent=1 // pred_region
      %518 = dma.done [#allocation11], 16
    $region41: #{tpu_custom_call.1} parent=1 // pred_fallthru
      _
    %519 = vsyncpa [#allocation5], 1
    %520 = vsyncpa [#allocation8], 1
    %521 = vsyncpa [#allocation6], 1
    %522 = vsyncpa [#allocation11], 1

</llo_original>
